<compile_context>
chip_gen: v7x
topology: tpu7x:2x2x1
jax: 0.10.0
libtpu: 0.0.40
codegen_flags: <defaults>
</compile_context>

<pallas_src>
import functools

import jax
import jax.numpy as jnp
from jax.experimental import pallas as pl
from jax.experimental.pallas import tpu as pltpu


# ----------------------------------------------------------------------------
# Helpers
# ----------------------------------------------------------------------------
def _round_up(x, m):
    return (x + m - 1) // m * m


def _mtile(m):
    """Pick (padded M, M tile)."""
    mp = _round_up(m, 8)
    if mp <= 512:
        return mp, mp
    mp = _round_up(m, 256)
    return mp, 256


def _ntile(np_):
    """np_ is already a multiple of 128; pick an N tile dividing it."""
    if np_ <= 512:
        return np_
    if np_ % 512 == 0:
        return 512
    if np_ % 256 == 0:
        return 256
    return 128


def _ktile(kp):
    """kp is a multiple of 128; pick a K tile dividing it, near 512."""
    if kp <= 1024:
        return kp
    best = 128
    d = 128
    limit = min(kp, 2048)
    while d <= limit:
        if kp % d == 0 and abs(d - 512) < abs(best - 512):
            best = d
        d += 128
    return best


# ----------------------------------------------------------------------------
# Pallas kernels
# ----------------------------------------------------------------------------
def _mm_kernel(a_ref, b_ref, s_ref, c_ref, o_ref, *, relu):
    """bf16 (tm,tk)x(tk,tn) matmul accumulated into the f32 output block over
    the K grid axis; epilogue applies per-channel scale/bias (+ReLU)."""
    k = pl.program_id(2)

    @pl.when(k == 0)
    def _():
        o_ref[...] = jnp.zeros_like(o_ref)

    o_ref[...] += jnp.dot(a_ref[...], b_ref[...],
                          preferred_element_type=jnp.float32)

    @pl.when(k == pl.num_programs(2) - 1)
    def _():
        y = o_ref[...] * s_ref[...] + c_ref[...]
        if relu:
            y = jnp.maximum(y, 0.0)
        o_ref[...] = y


def _mm_res_kernel(a_ref, b_ref, s_ref, c_ref, r_ref, o_ref, *, relu):
    """Same as _mm_kernel but with the residual add fused into the epilogue."""
    k = pl.program_id(2)

    @pl.when(k == 0)
    def _():
        o_ref[...] = jnp.zeros_like(o_ref)

    o_ref[...] += jnp.dot(a_ref[...], b_ref[...],
                          preferred_element_type=jnp.float32)

    @pl.when(k == pl.num_programs(2) - 1)
    def _():
        y = o_ref[...] * s_ref[...] + c_ref[...] + r_ref[...]
        if relu:
            y = jnp.maximum(y, 0.0)
        o_ref[...] = y


def _maxpool_kernel(x_ref, o_ref):
    # x: (9, tm, C) -> max over the 9 pooling taps
    m = x_ref[0]
    for i in range(1, 9):
        m = jnp.maximum(m, x_ref[i])
    o_ref[...] = m


def _avgpool_kernel(x_ref, o_ref, *, inv_hw):
    # x: (B, H*W, tc) -> mean over the spatial axis (axis=1), lane-dense C
    o_ref[...] = jnp.sum(x_ref[...], axis=1) * inv_hw


# ----------------------------------------------------------------------------
# Pallas wrappers
# ----------------------------------------------------------------------------
def matmul_bn(a, p, relu, residual=None):
    """a:(M,K) f32 @ pre-padded bf16 weight p['w']:(Kp,Np), then y*scale+bias
    (+ residual) (+ ReLU).  Returns (M, p['n']) f32."""
    M, K = a.shape
    Kp, Np = p["w"].shape
    n_true = p["n"]

    Mp, tm = _mtile(M)
    tn = _ntile(Np)
    tk = _ktile(Kp)

    a_p = jnp.pad(a, ((0, Mp - M), (0, Kp - K))).astype(jnp.bfloat16)

    in_arrays = [a_p, p["w"], p["scale"], p["bias"]]
    in_specs = [
        pl.BlockSpec((tm, tk), lambda i, j, k: (i, k)),
        pl.BlockSpec((tk, tn), lambda i, j, k: (k, j)),
        pl.BlockSpec((1, tn), lambda i, j, k: (0, j)),
        pl.BlockSpec((1, tn), lambda i, j, k: (0, j)),
    ]

    if residual is not None:
        r_p = jnp.pad(residual.astype(jnp.float32),
                      ((0, Mp - M), (0, Np - residual.shape[1])))
        in_arrays.append(r_p)
        in_specs.append(pl.BlockSpec((tm, tn), lambda i, j, k: (i, j)))
        kern = functools.partial(_mm_res_kernel, relu=relu)
    else:
        kern = functools.partial(_mm_kernel, relu=relu)

    grid = (Mp // tm, Np // tn, Kp // tk)

    out = pl.pallas_call(
        kern,
        out_shape=jax.ShapeDtypeStruct((Mp, Np), jnp.float32),
        grid_spec=pltpu.PrefetchScalarGridSpec(
            num_scalar_prefetch=0,
            grid=grid,
            in_specs=in_specs,
            out_specs=pl.BlockSpec((tm, tn), lambda i, j, k: (i, j)),
        ),
        compiler_params=pltpu.CompilerParams(
            dimension_semantics=("parallel", "parallel", "arbitrary")),
    )(*in_arrays)
    return out[:M, :n_true]


def maxpool_3x3_s2(x):
    """3x3 / stride-2 / pad-1 max pool on NHWC via a tiled tap-reduce kernel."""
    B, H, W, C = x.shape
    pad = 1
    xp = jnp.pad(x, ((0, 0), (pad, pad), (pad, pad), (0, 0)),
                 constant_values=-jnp.inf)
    Ho = (H + 2 * pad - 3) // 2 + 1
    Wo = (W + 2 * pad - 3) // 2 + 1
    views = []
    for i in range(3):
        for j in range(3):
            v = jax.lax.slice(
                xp,
                (0, i, j, 0),
                (B, i + (Ho - 1) * 2 + 1, j + (Wo - 1) * 2 + 1, C),
                (1, 2, 2, 1),
            )
            views.append(v.reshape(B * Ho * Wo, C))
    stacked = jnp.stack(views, axis=0)  # (9, M, C)

    M = B * Ho * Wo
    Mp, tm = _mtile(M)
    Cp = _round_up(C, 128)
    stacked_p = jnp.pad(stacked, ((0, 0), (0, Mp - M), (0, Cp - C)),
                        constant_values=-jnp.inf)

    out = pl.pallas_call(
        _maxpool_kernel,
        out_shape=jax.ShapeDtypeStruct((Mp, Cp), jnp.float32),
        grid_spec=pltpu.PrefetchScalarGridSpec(
            num_scalar_prefetch=0,
            grid=(Mp // tm,),
            in_specs=[pl.BlockSpec((9, tm, Cp), lambda i: (0, i, 0))],
            out_specs=pl.BlockSpec((tm, Cp), lambda i: (i, 0)),
        ),
        compiler_params=pltpu.CompilerParams(
            dimension_semantics=("parallel",)),
    )(stacked_p)
    return out[:M, :C].reshape(B, Ho, Wo, C)


def global_avg_pool(x):
    """x: (B, H, W, C) -> (B, C), lane-dense C, reduction over spatial axis."""
    B, H, W, C = x.shape
    HW = H * W
    xr = x.reshape(B, HW, C)
    Cp = _round_up(C, 128)
    if Cp != C:
        xr = jnp.pad(xr, ((0, 0), (0, 0), (0, Cp - C)))
    tc = min(512, Cp)
    while Cp % tc:
        tc -= 128

    out = pl.pallas_call(
        functools.partial(_avgpool_kernel, inv_hw=1.0 / float(HW)),
        out_shape=jax.ShapeDtypeStruct((B, Cp), jnp.float32),
        grid_spec=pltpu.PrefetchScalarGridSpec(
            num_scalar_prefetch=0,
            grid=(Cp // tc,),
            in_specs=[pl.BlockSpec((B, HW, tc), lambda c: (0, 0, c))],
            out_specs=pl.BlockSpec((B, tc), lambda c: (0, c)),
        ),
        compiler_params=pltpu.CompilerParams(
            dimension_semantics=("parallel",)),
    )(xr)
    return out[:, :C]


# ----------------------------------------------------------------------------
# JAX glue: im2col and conv+BN wrappers
# ----------------------------------------------------------------------------
def im2col(x, kh, kw, stride, padding):
    """x: NHWC -> (B*Ho*Wo, kh*kw*Cin) patches (kh, kw, Cin ordering)."""
    B, H, W, C = x.shape
    xp = jnp.pad(x, ((0, 0), (padding, padding), (padding, padding), (0, 0)))
    Ho = (H + 2 * padding - kh) // stride + 1
    Wo = (W + 2 * padding - kw) // stride + 1
    cols = []
    for i in range(kh):
        for j in range(kw):
            v = jax.lax.slice(
                xp,
                (0, i, j, 0),
                (B, i + (Ho - 1) * stride + 1, j + (Wo - 1) * stride + 1, C),
                (1, stride, stride, 1),
            )  # (B, Ho, Wo, C)
            cols.append(v)
    patches = jnp.stack(cols, axis=3)  # (B, Ho, Wo, kh*kw, C)
    return patches.reshape(B * Ho * Wo, kh * kw * C), Ho, Wo


def conv_bn(x, p, kh, kw, stride, padding, relu, residual=None):
    """Conv (no bias) + folded eval-mode BN (+residual) (+ReLU) via Pallas."""
    B = x.shape[0]
    if kh == 1 and kw == 1 and padding == 0:
        if stride != 1:
            x = x[:, ::stride, ::stride, :]
        Ho, Wo = x.shape[1], x.shape[2]
        cols = x.reshape(B * Ho * Wo, x.shape[3])
    else:
        cols, Ho, Wo = im2col(x, kh, kw, stride, padding)
    y = matmul_bn(cols, p, relu, residual=residual)
    return y.reshape(B, Ho, Wo, -1)


def bottleneck(x, p, stride, has_downsample):
    out = conv_bn(x, p["conv1"], 1, 1, 1, 0, relu=True)
    out = conv_bn(out, p["conv2"], 3, 3, stride, 1, relu=True)
    if has_downsample:
        identity = conv_bn(x, p["down"], 1, 1, stride, 0, relu=False)
    else:
        identity = x
    B, H, W, C = identity.shape
    res = identity.reshape(B * H * W, C)
    # residual add + ReLU fused into conv3's matmul epilogue
    out = conv_bn(out, p["conv3"], 1, 1, 1, 0, relu=True, residual=res)
    return out


# ----------------------------------------------------------------------------
# Synthetic deterministic parameters (shapes exactly as in torchvision ResNet50)
# Weights are pre-padded to multiples of 128 and pre-cast to bf16.
# ----------------------------------------------------------------------------
def _pack(w, scale, bias, cout):
    K, N = w.shape
    Kp = _round_up(K, 128)
    Np = _round_up(N, 128)
    return {
        "w": jnp.pad(w, ((0, Kp - K), (0, Np - N))).astype(jnp.bfloat16),
        "scale": jnp.pad(scale, (0, Np - N)).reshape(1, Np).astype(jnp.float32),
        "bias": jnp.pad(bias, (0, Np - N)).reshape(1, Np).astype(jnp.float32),
        "n": cout,
    }


def conv_bn_params(key, cin, cout, kh, kw):
    k1, k2, k3, k4, k5 = jax.random.split(key, 5)
    K = kh * kw * cin
    w = jax.random.normal(k1, (K, cout), jnp.float32) * jnp.sqrt(2.0 / K)
    gamma = 1.0 + 0.1 * jax.random.normal(k2, (cout,), jnp.float32)
    beta = 0.1 * jax.random.normal(k3, (cout,), jnp.float32)
    mean = 0.1 * jax.random.normal(k4, (cout,), jnp.float32)
    var = 1.0 + 0.1 * jnp.abs(jax.random.normal(k5, (cout,), jnp.float32))
    scale = gamma / jnp.sqrt(var + 1e-5)          # eval-mode BN fold
    bias = beta - mean * scale
    return _pack(w, scale, bias, cout)


def make_params(key):
    keys = iter(jax.random.split(key, 256))
    params = {"conv1": conv_bn_params(next(keys), 3, 64, 7, 7)}

    def make_layer(inplanes, planes, nblocks):
        blocks = []
        for i in range(nblocks):
            cin = inplanes if i == 0 else planes * 4
            blk = {
                "conv1": conv_bn_params(next(keys), cin, planes, 1, 1),
                "conv2": conv_bn_params(next(keys), planes, planes, 3, 3),
                "conv3": conv_bn_params(next(keys), planes, planes * 4, 1, 1),
            }
            if i == 0:
                blk["down"] = conv_bn_params(next(keys), cin, planes * 4, 1, 1)
            blocks.append(blk)
        return blocks

    params["layer1"] = make_layer(64, 64, 3)      # -> 256 ch
    params["layer2"] = make_layer(256, 128, 4)    # -> 512 ch, stride 2
    params["layer3"] = make_layer(512, 256, 6)    # -> 1024 ch, stride 2
    params["layer4"] = make_layer(1024, 512, 3)   # -> 2048 ch, stride 2

    # fc_fuse: Linear(4096,1024) + BatchNorm1d(1024) + ReLU, folded
    k1, k2, k3, k4, k5, k6 = jax.random.split(next(keys), 6)
    w = jax.random.normal(k1, (4096, 1024), jnp.float32) / jnp.sqrt(4096.0)
    b = 0.01 * jax.random.normal(k2, (1024,), jnp.float32)
    gamma = 1.0 + 0.1 * jax.random.normal(k3, (1024,), jnp.float32)
    beta = 0.1 * jax.random.normal(k4, (1024,), jnp.float32)
    mean = 0.1 * jax.random.normal(k5, (1024,), jnp.float32)
    var = 1.0 + 0.1 * jnp.abs(jax.random.normal(k6, (1024,), jnp.float32))
    scale = gamma / jnp.sqrt(var + 1e-5)
    bias = beta - mean * scale + scale * b
    params["fc_fuse"] = _pack(w, scale, bias, 1024)
    return params


# ----------------------------------------------------------------------------
# ResNet50M forward (eval mode -> returns combofeat, shape (B, 3072))
# ----------------------------------------------------------------------------
def resnet50m_forward(params, x_nchw):
    x = jnp.transpose(x_nchw, (0, 2, 3, 1))  # NCHW -> NHWC

    # layers1 = conv1(7x7,s2,p3) + bn1 + relu
    x1 = conv_bn(x, params["conv1"], 7, 7, 2, 3, relu=True)

    # layers2 = maxpool(3x3,s2,p1) + resnet layer1
    x2 = maxpool_3x3_s2(x1)
    for i, p in enumerate(params["layer1"]):
        x2 = bottleneck(x2, p, stride=1, has_downsample=(i == 0))

    # layers3 = resnet layer2
    x3 = x2
    for i, p in enumerate(params["layer2"]):
        x3 = bottleneck(x3, p, stride=2 if i == 0 else 1, has_downsample=(i == 0))

    # layers4 = resnet layer3
    x4 = x3
    for i, p in enumerate(params["layer3"]):
        x4 = bottleneck(x4, p, stride=2 if i == 0 else 1, has_downsample=(i == 0))

    # layers5a / 5b / 5c = resnet layer4 blocks
    x5a = bottleneck(x4, params["layer4"][0], stride=2, has_downsample=True)
    x5b = bottleneck(x5a, params["layer4"][1], stride=1, has_downsample=False)
    x5c = bottleneck(x5b, params["layer4"][2], stride=1, has_downsample=False)

    x5a_feat = global_avg_pool(x5a)   # (B, 2048)
    x5b_feat = global_avg_pool(x5b)   # (B, 2048)
    x5c_feat = global_avg_pool(x5c)   # (B, 2048)

    midfeat = jnp.concatenate([x5a_feat, x5b_feat], axis=1)        # (B, 4096)
    midfeat = matmul_bn(midfeat, params["fc_fuse"], relu=True)     # (B, 1024)

    combofeat = jnp.concatenate([x5c_feat, midfeat], axis=1)       # (B, 3072)
    # TODO(synk): training-mode classifier branch (Linear(3072, num_classes))
    # omitted; eval-mode forward returns combofeat exactly as the module does.
    return combofeat


if __name__ == "__main__":
    key = jax.random.PRNGKey(0)
    pkey, xkey = jax.random.split(key)
    params = make_params(pkey)
    x = jax.random.normal(xkey, (2, 3, 16, 16), jnp.float32)  # small NCHW input

    out = resnet50m_forward(params, x)
    out = jax.block_until_ready(out)

    assert out.shape == (2, 3072), out.shape
    assert bool(jnp.all(jnp.isfinite(out)))
    print("KERNEL_OK")
</pallas_src>

<mosaic_0001>
module attributes {stable_mosaic.version = 11 : i64} {
  func.func @_mm_kernel(%arg0: i32, %arg1: i32, %arg2: i32, %arg3: memref<128x256xbf16, #tpu.memory_space<vmem>>, %arg4: memref<256x128xbf16, #tpu.memory_space<vmem>>, %arg5: memref<1x128xf32, #tpu.memory_space<vmem>>, %arg6: memref<1x128xf32, #tpu.memory_space<vmem>>, %arg7: memref<128x128xf32, #tpu.memory_space<vmem>>) attributes {dimension_semantics = [#tpu.dimension_semantics<parallel>, #tpu.dimension_semantics<parallel>, #tpu.dimension_semantics<arbitrary>], iteration_bounds = array<i64: 1, 1, 1>, scalar_prefetch = 0 : i64, scratch_operands = 0 : i64, tpu.core_type = #tpu.core_type<tc>, window_params = [{transform_indices = @transform_0, window_bounds = array<i64: 128, 256>}, {transform_indices = @transform_1, window_bounds = array<i64: 256, 128>}, {transform_indices = @transform_2, window_bounds = array<i64: 1, 128>}, {transform_indices = @transform_3, window_bounds = array<i64: 1, 128>}, {transform_indices = @transform_4, window_bounds = array<i64: 128, 128>}]} {
    %c0_i32 = arith.constant 0 : i32
    %0 = arith.cmpi eq, %arg2, %c0_i32 : i32
    %1 = arith.extui %0 : i1 to i32
    %c0_i32_0 = arith.constant 0 : i32
    %2 = arith.cmpi ne, %1, %c0_i32_0 : i32
    scf.if %2 {
      %cst_10 = arith.constant 0.000000e+00 : f32
      %12 = vector.broadcast %cst_10 : f32 to vector<128x128xf32>
      %c0_11 = arith.constant 0 : index
      %c0_12 = arith.constant 0 : index
      %13 = vector.load %arg7[%c0_11, %c0_12] : memref<128x128xf32, #tpu.memory_space<vmem>>, vector<128x128xf32>
      tpu.vector_store %arg7[%c0_11, %c0_12], %12 {strides = array<i32>} : memref<128x128xf32, #tpu.memory_space<vmem>>, vector<128x128xf32>,
    } else {
    }
    %c0 = arith.constant 0 : index
    %c0_1 = arith.constant 0 : index
    %3 = vector.load %arg7[%c0, %c0_1] : memref<128x128xf32, #tpu.memory_space<vmem>>, vector<128x128xf32>
    %c0_2 = arith.constant 0 : index
    %c0_3 = arith.constant 0 : index
    %4 = vector.load %arg3[%c0_2, %c0_3] : memref<128x256xbf16, #tpu.memory_space<vmem>>, vector<128x256xbf16>
    %c0_4 = arith.constant 0 : index
    %c0_5 = arith.constant 0 : index
    %5 = vector.load %arg4[%c0_4, %c0_5] : memref<256x128xbf16, #tpu.memory_space<vmem>>, vector<256x128xbf16>
    %cst = arith.constant dense<0.000000e+00> : vector<128x128xf32>
    %6 = tpu.matmul %4, %5, %cst {dimension_numbers = #tpu.dot_dimension_numbers<[1], [0], [0], [1], [0, 0, 1, 1], [], []>} : vector<128x256xbf16>, vector<256x128xbf16>, vector<128x128xf32> -> vector<128x128xf32>
    %7 = arith.addf %3, %6 : vector<128x128xf32>
    %c0_6 = arith.constant 0 : index
    %c0_7 = arith.constant 0 : index
    %8 = vector.load %arg7[%c0_6, %c0_7] : memref<128x128xf32, #tpu.memory_space<vmem>>, vector<128x128xf32>
    tpu.vector_store %arg7[%c0_6, %c0_7], %7 {strides = array<i32>} : memref<128x128xf32, #tpu.memory_space<vmem>>, vector<128x128xf32>,
    %c0_i32_8 = arith.constant 0 : i32
    %9 = arith.cmpi eq, %arg2, %c0_i32_8 : i32
    %10 = arith.extui %9 : i1 to i32
    %c0_i32_9 = arith.constant 0 : i32
    %11 = arith.cmpi ne, %10, %c0_i32_9 : i32
    scf.if %11 {
      %c0_10 = arith.constant 0 : index
      %c0_11 = arith.constant 0 : index
      %12 = vector.load %arg7[%c0_10, %c0_11] : memref<128x128xf32, #tpu.memory_space<vmem>>, vector<128x128xf32>
      %c0_12 = arith.constant 0 : index
      %c0_13 = arith.constant 0 : index
      %13 = vector.load %arg5[%c0_12, %c0_13] : memref<1x128xf32, #tpu.memory_space<vmem>>, vector<1x128xf32>
      %14 = vector.broadcast %13 : vector<1x128xf32> to vector<128x128xf32>
      %15 = arith.mulf %12, %14 : vector<128x128xf32>
      %c0_14 = arith.constant 0 : index
      %c0_15 = arith.constant 0 : index
      %16 = vector.load %arg6[%c0_14, %c0_15] : memref<1x128xf32, #tpu.memory_space<vmem>>, vector<1x128xf32>
      %17 = vector.broadcast %16 : vector<1x128xf32> to vector<128x128xf32>
      %18 = arith.addf %15, %17 : vector<128x128xf32>
      %cst_16 = arith.constant 0.000000e+00 : f32
      %19 = vector.broadcast %cst_16 : f32 to vector<128x128xf32>
      %20 = arith.maximumf %18, %19 : vector<128x128xf32>
      %c0_17 = arith.constant 0 : index
      %c0_18 = arith.constant 0 : index
      %21 = vector.load %arg7[%c0_17, %c0_18] : memref<128x128xf32, #tpu.memory_space<vmem>>, vector<128x128xf32>
      tpu.vector_store %arg7[%c0_17, %c0_18], %20 {strides = array<i32>} : memref<128x128xf32, #tpu.memory_space<vmem>>, vector<128x128xf32>,
    } else {
    }
    return
  }
  func.func @transform_0(%arg0: i32, %arg1: i32, %arg2: i32) -> (i32, i32) {
    %c0_i32 = arith.constant 0 : i32
    return %arg0, %arg2 : i32, i32
  }
  func.func @transform_1(%arg0: i32, %arg1: i32, %arg2: i32) -> (i32, i32) {
    %c0_i32 = arith.constant 0 : i32
    return %arg2, %arg1 : i32, i32
  }
  func.func @transform_2(%arg0: i32, %arg1: i32, %arg2: i32) -> (i32, i32) {
    %c0_i32 = arith.constant 0 : i32
    %c0_i32_0 = arith.constant 0 : i32
    return %c0_i32, %arg1 : i32, i32
  }
  func.func @transform_3(%arg0: i32, %arg1: i32, %arg2: i32) -> (i32, i32) {
    %c0_i32 = arith.constant 0 : i32
    %c0_i32_0 = arith.constant 0 : i32
    return %c0_i32, %arg1 : i32, i32
  }
  func.func @transform_4(%arg0: i32, %arg1: i32, %arg2: i32) -> (i32, i32) {
    %c0_i32 = arith.constant 0 : i32
    return %arg0, %arg1 : i32, i32
  }
}

</mosaic_0001>

<llo_original>
// kernel: tpu_custom_call.1
$region0: #{tpu_custom_call.1}
  #allocation0 [shape = 'u32[]', space=smem, size = 0x4, offset = 0x4, fixed_abs, tag = 'smem constant byte address 0x4 - core index']
  #allocation1 [shape = 'u32[144,128]{1,0:T(1,128)}', space=vmem, size = 0x12000, scoped, tag = 'internal scratch']
  %s0 = inlined_call_operand.hbm [shape: bf16[128,256], index: 0, kind: input, shape index: {}]
  %s1 = inlined_call_operand.hbm [shape: bf16[256,128], index: 1, kind: input, shape index: {}]
  %s2 = inlined_call_operand.vmem [shape: f32[1,128], index: 2, kind: input, shape index: {}]
  %s3 = inlined_call_operand.vmem [shape: f32[1,128], index: 3, kind: input, shape index: {}]
  %s4 = inlined_call_operand.hbm [shape: f32[128,128], index: 4, kind: output, shape index: {}]
  %s5 = sld [smem:[#allocation0]]
  $region42: #{tpu_custom_call.1} parent=0
    _
  %s7 = ssub.s32 1, %s5
  %s8 = scalar_select 0, %s7, %s5
  $region1: #{tpu_custom_call.1} parent=0
    #allocation2 [shape = 'u8[65536]{0}', space=vmem, size = 0x10000, scoped, tag = 'input window, operand 0, single buffered']
    #allocation3 [shape = 's32[1]{0}', space=sflag, size = 0x4, scoped, tag = 'scoped memory for tpu_custom_call.1']
    #allocation4 [shape = 's32[1]{0}', space=sflag, size = 0x4, scoped, tag = 'scoped memory for tpu_custom_call.1']
    #allocation5 [shape = 'u8[65536]{0}', space=vmem, size = 0x10000, scoped, tag = 'input window, operand 1, single buffered']
    #allocation6 [shape = 's32[1]{0}', space=sflag, size = 0x4, scoped, tag = 'scoped memory for tpu_custom_call.1']
    #allocation7 [shape = 'u8[65536]{0}', space=vmem, size = 0x10000, scoped, tag = 'output window, operand 0, single buffered']
    %9 = vsyncpa [#allocation3], 0
    %10 = vsyncpa [#allocation6], 0
    %11 = vsyncpa [#allocation4], 0
    // Predicated region
    $region2: #{tpu_custom_call.1} parent=1 // pred_check
      _
    $region3: #{tpu_custom_call.1} parent=1 // pred_check_branch
      %13 = sbr.rel (0) target = $region5
    $region4: #{tpu_custom_call.1} parent=1 // pred_region
      %s15 = ssub.s32 2048, 2048
      %16 = vsyncadd [#allocation3], %s15
      %s17 = sshll.u32 [#allocation2], 4
      %s18 = int_to_ptr.vmem [resolvable:$true] %s17
      %23 = dma.hbm_to_vmem [thread:$0]  %s0, 2048, %s18, [#allocation3], 128, 128, 8
    $region5: #{tpu_custom_call.1} parent=1 // pred_fallthru
      _
    // Predicated region
    $region6: #{tpu_custom_call.1} parent=1 // pred_check
      _
    $region7: #{tpu_custom_call.1} parent=1 // pred_check_branch
      %25 = sbr.rel (0) target = $region9
    $region8: #{tpu_custom_call.1} parent=1 // pred_region
      %s27 = ssub.s32 2048, 2048
      %28 = vsyncadd [#allocation6], %s27
      %s29 = sshll.u32 [#allocation5], 4
      %s30 = int_to_ptr.vmem [resolvable:$true] %s29
      %35 = dma.hbm_to_vmem [thread:$0]  %s1, 2048, %s30, [#allocation6], 64, 64, 4
    $region9: #{tpu_custom_call.1} parent=1 // pred_fallthru
      _
    // Predicated region
    $region10: #{tpu_custom_call.1} parent=1 // pred_check
      _
    $region11: #{tpu_custom_call.1} parent=1 // pred_check_branch
      %37 = sbr.rel (0) target = $region13
    $region12: #{tpu_custom_call.1} parent=1 // pred_region
      _
    $region13: #{tpu_custom_call.1} parent=1 // pred_fallthru
      _
    // Predicated region
    $region14: #{tpu_custom_call.1} parent=1 // pred_check
      _
    $region15: #{tpu_custom_call.1} parent=1 // pred_check_branch
      %39 = sbr.rel (0) target = $region17
    $region16: #{tpu_custom_call.1} parent=1 // pred_region
      _
    $region17: #{tpu_custom_call.1} parent=1 // pred_fallthru
      _
    // Predicated region
    $region18: #{tpu_custom_call.1} parent=1 // pred_check
      _
    $region19: #{tpu_custom_call.1} parent=1 // pred_check_branch
      %41 = sbr.rel (0) target = $region21
    $region20: #{tpu_custom_call.1} parent=1 // pred_region
      %42 = dma.done [#allocation3], 2048
    $region21: #{tpu_custom_call.1} parent=1 // pred_fallthru
      _
    // Predicated region
    $region22: #{tpu_custom_call.1} parent=1 // pred_check
      _
    $region23: #{tpu_custom_call.1} parent=1 // pred_check_branch
      %44 = sbr.rel (0) target = $region25
    $region24: #{tpu_custom_call.1} parent=1 // pred_region
      %45 = dma.done [#allocation6], 2048
    $region25: #{tpu_custom_call.1} parent=1 // pred_fallthru
      _
    %p47 = scmp.eq.s32.totalorder 0, 0
    // Predicated region
    $region26: #{tpu_custom_call.1} parent=1 // pred_check
      %p48 = pneg %p47
    $region27: #{tpu_custom_call.1} parent=1 // pred_check_branch
      %50 = sbr.rel (%p48) target = $region29
    $region28: #{tpu_custom_call.1} parent=1 // pred_region
      %51 = vst [vmem:[#allocation7] sm:$0xff] 0.0
      %52 = vst [vmem:[#allocation7 + $0x8] sm:$0xff] 0.0
      %53 = vst [vmem:[#allocation7 + $0x10] sm:$0xff] 0.0
      %54 = vst [vmem:[#allocation7 + $0x18] sm:$0xff] 0.0
      %55 = vst [vmem:[#allocation7 + $0x20] sm:$0xff] 0.0
      %56 = vst [vmem:[#allocation7 + $0x28] sm:$0xff] 0.0
      %57 = vst [vmem:[#allocation7 + $0x30] sm:$0xff] 0.0
      %58 = vst [vmem:[#allocation7 + $0x38] sm:$0xff] 0.0
      %59 = vst [vmem:[#allocation7 + $0x40] sm:$0xff] 0.0
      %60 = vst [vmem:[#allocation7 + $0x48] sm:$0xff] 0.0
      %61 = vst [vmem:[#allocation7 + $0x50] sm:$0xff] 0.0
      %62 = vst [vmem:[#allocation7 + $0x58] sm:$0xff] 0.0
      %63 = vst [vmem:[#allocation7 + $0x60] sm:$0xff] 0.0
      %64 = vst [vmem:[#allocation7 + $0x68] sm:$0xff] 0.0
      %65 = vst [vmem:[#allocation7 + $0x70] sm:$0xff] 0.0
      %66 = vst [vmem:[#allocation7 + $0x78] sm:$0xff] 0.0
    $region29: #{tpu_custom_call.1} parent=1 // pred_fallthru
      _
    %v67 = vld [vmem:[#allocation7] sm:$0xff]
    %v68 = vld [vmem:[#allocation7 + $0x8] sm:$0xff]
    %v69 = vld [vmem:[#allocation7 + $0x10] sm:$0xff]
    %v70 = vld [vmem:[#allocation7 + $0x18] sm:$0xff]
    %v71 = vld [vmem:[#allocation7 + $0x20] sm:$0xff]
    %v72 = vld [vmem:[#allocation7 + $0x28] sm:$0xff]
    %v73 = vld [vmem:[#allocation7 + $0x30] sm:$0xff]
    %v74 = vld [vmem:[#allocation7 + $0x38] sm:$0xff]
    %v75 = vld [vmem:[#allocation7 + $0x40] sm:$0xff]
    %v76 = vld [vmem:[#allocation7 + $0x48] sm:$0xff]
    %v77 = vld [vmem:[#allocation7 + $0x50] sm:$0xff]
    %v78 = vld [vmem:[#allocation7 + $0x58] sm:$0xff]
    %v79 = vld [vmem:[#allocation7 + $0x60] sm:$0xff]
    %v80 = vld [vmem:[#allocation7 + $0x68] sm:$0xff]
    %v81 = vld [vmem:[#allocation7 + $0x70] sm:$0xff]
    %v82 = vld [vmem:[#allocation7 + $0x78] sm:$0xff]
    %v83 = vld [vmem:[#allocation2] sm:$0xff]
    %v84 = vld [vmem:[#allocation2 + $0x8] sm:$0xff]
    %v85 = vld [vmem:[#allocation2 + $0x10] sm:$0xff]
    %v86 = vld [vmem:[#allocation2 + $0x18] sm:$0xff]
    %v87 = vld [vmem:[#allocation2 + $0x20] sm:$0xff]
    %v88 = vld [vmem:[#allocation2 + $0x28] sm:$0xff]
    %v89 = vld [vmem:[#allocation2 + $0x30] sm:$0xff]
    %v90 = vld [vmem:[#allocation2 + $0x38] sm:$0xff]
    %v91 = vld [vmem:[#allocation2 + $0x40] sm:$0xff]
    %v92 = vld [vmem:[#allocation2 + $0x48] sm:$0xff]
    %v93 = vld [vmem:[#allocation2 + $0x50] sm:$0xff]
    %v94 = vld [vmem:[#allocation2 + $0x58] sm:$0xff]
    %v95 = vld [vmem:[#allocation2 + $0x60] sm:$0xff]
    %v96 = vld [vmem:[#allocation2 + $0x68] sm:$0xff]
    %v97 = vld [vmem:[#allocation2 + $0x70] sm:$0xff]
    %v98 = vld [vmem:[#allocation2 + $0x78] sm:$0xff]
    %v99 = vld [vmem:[#allocation5] sm:$0xf]
    %v100 = vld [vmem:[#allocation5 + $0x4] sm:$0xf]
    %v101 = vld [vmem:[#allocation5 + $0x8] sm:$0xf]
    %v102 = vld [vmem:[#allocation5 + $0xc] sm:$0xf]
    %v103 = vld [vmem:[#allocation5 + $0x10] sm:$0xf]
    %v104 = vld [vmem:[#allocation5 + $0x14] sm:$0xf]
    %v105 = vld [vmem:[#allocation5 + $0x18] sm:$0xf]
    %v106 = vld [vmem:[#allocation5 + $0x1c] sm:$0xf]
    %v107 = vld [vmem:[#allocation5 + $0x20] sm:$0xf]
    %v108 = vld [vmem:[#allocation5 + $0x24] sm:$0xf]
    %v109 = vld [vmem:[#allocation5 + $0x28] sm:$0xf]
    %v110 = vld [vmem:[#allocation5 + $0x2c] sm:$0xf]
    %v111 = vld [vmem:[#allocation5 + $0x30] sm:$0xf]
    %v112 = vld [vmem:[#allocation5 + $0x34] sm:$0xf]
    %v113 = vld [vmem:[#allocation5 + $0x38] sm:$0xf]
    %v114 = vld [vmem:[#allocation5 + $0x3c] sm:$0xf]
    %v115 = vld [vmem:[#allocation5 + $0x40] sm:$0xf]
    %v116 = vld [vmem:[#allocation5 + $0x44] sm:$0xf]
    %v117 = vld [vmem:[#allocation5 + $0x48] sm:$0xf]
    %v118 = vld [vmem:[#allocation5 + $0x4c] sm:$0xf]
    %v119 = vld [vmem:[#allocation5 + $0x50] sm:$0xf]
    %v120 = vld [vmem:[#allocation5 + $0x54] sm:$0xf]
    %v121 = vld [vmem:[#allocation5 + $0x58] sm:$0xf]
    %v122 = vld [vmem:[#allocation5 + $0x5c] sm:$0xf]
    %v123 = vld [vmem:[#allocation5 + $0x60] sm:$0xf]
    %v124 = vld [vmem:[#allocation5 + $0x64] sm:$0xf]
    %v125 = vld [vmem:[#allocation5 + $0x68] sm:$0xf]
    %v126 = vld [vmem:[#allocation5 + $0x6c] sm:$0xf]
    %v127 = vld [vmem:[#allocation5 + $0x70] sm:$0xf]
    %v128 = vld [vmem:[#allocation5 + $0x74] sm:$0xf]
    %v129 = vld [vmem:[#allocation5 + $0x78] sm:$0xf]
    %v130 = vld [vmem:[#allocation5 + $0x7c] sm:$0xf]
    %v147 = vunpack.c.l.b16 %v83
    %v148 = vunpack.c.h.b16 %v83
    %v149 = vunpack.c.l.b16 %v84
    %v150 = vunpack.c.h.b16 %v84
    %v151 = vunpack.c.l.b16 %v85
    %v152 = vunpack.c.h.b16 %v85
    %v153 = vunpack.c.l.b16 %v86
    %v154 = vunpack.c.h.b16 %v86
    %v155 = vunpack.c.l.b16 %v87
    %v156 = vunpack.c.h.b16 %v87
    %v157 = vunpack.c.l.b16 %v88
    %v158 = vunpack.c.h.b16 %v88
    %v159 = vunpack.c.l.b16 %v89
    %v160 = vunpack.c.h.b16 %v89
    %v161 = vunpack.c.l.b16 %v90
    %v162 = vunpack.c.h.b16 %v90
    %v163 = vunpack.c.l.b16 %v91
    %v164 = vunpack.c.h.b16 %v91
    %v165 = vunpack.c.l.b16 %v92
    %v166 = vunpack.c.h.b16 %v92
    %v167 = vunpack.c.l.b16 %v93
    %v168 = vunpack.c.h.b16 %v93
    %v169 = vunpack.c.l.b16 %v94
    %v170 = vunpack.c.h.b16 %v94
    %v171 = vunpack.c.l.b16 %v95
    %v172 = vunpack.c.h.b16 %v95
    %v173 = vunpack.c.l.b16 %v96
    %v174 = vunpack.c.h.b16 %v96
    %v175 = vunpack.c.l.b16 %v97
    %v176 = vunpack.c.h.b16 %v97
    %v177 = vunpack.c.l.b16 %v98
    %v178 = vunpack.c.h.b16 %v98
    %v179 = vpack.c.b16 %v149, %v147
    %v180 = vpack.c.b16 %v150, %v148
    %v181 = vpack.c.b16 %v153, %v151
    %v182 = vpack.c.b16 %v154, %v152
    %v183 = vpack.c.b16 %v157, %v155
    %v184 = vpack.c.b16 %v158, %v156
    %v185 = vpack.c.b16 %v161, %v159
    %v186 = vpack.c.b16 %v162, %v160
    %v187 = vpack.c.b16 %v165, %v163
    %v188 = vpack.c.b16 %v166, %v164
    %v189 = vpack.c.b16 %v169, %v167
    %v190 = vpack.c.b16 %v170, %v168
    %v191 = vpack.c.b16 %v173, %v171
    %v192 = vpack.c.b16 %v174, %v172
    %v193 = vpack.c.b16 %v177, %v175
    %v194 = vpack.c.b16 %v178, %v176
    %v243 = vunpack.c.l.b16 %v99
    %v244 = vunpack.c.l.b16 %v100
    %v245 = vunpack.c.l.b16 %v101
    %v246 = vunpack.c.l.b16 %v102
    %v247 = vunpack.c.l.b16 %v103
    %v248 = vunpack.c.l.b16 %v104
    %v249 = vunpack.c.l.b16 %v105
    %v250 = vunpack.c.l.b16 %v106
    %v251 = vunpack.c.l.b16 %v107
    %v252 = vunpack.c.l.b16 %v108
    %v253 = vunpack.c.l.b16 %v109
    %v254 = vunpack.c.l.b16 %v110
    %v255 = vunpack.c.l.b16 %v111
    %v256 = vunpack.c.l.b16 %v112
    %v257 = vunpack.c.l.b16 %v113
    %v258 = vunpack.c.l.b16 %v114
    %v259 = vunpack.c.l.b16 %v115
    %v260 = vunpack.c.l.b16 %v116
    %v261 = vunpack.c.l.b16 %v117
    %v262 = vunpack.c.l.b16 %v118
    %v263 = vunpack.c.l.b16 %v119
    %v264 = vunpack.c.l.b16 %v120
    %v265 = vunpack.c.l.b16 %v121
    %v266 = vunpack.c.l.b16 %v122
    %v267 = vunpack.c.l.b16 %v123
    %v268 = vunpack.c.l.b16 %v124
    %v269 = vunpack.c.l.b16 %v125
    %v270 = vunpack.c.l.b16 %v126
    %v271 = vunpack.c.l.b16 %v127
    %v272 = vunpack.c.l.b16 %v128
    %v273 = vunpack.c.l.b16 %v129
    %v274 = vunpack.c.l.b16 %v130
    %v275 = vpack.c.b16 %v244, %v243
    %v276 = vpack.c.b16 %v246, %v245
    %v277 = vpack.c.b16 %v248, %v247
    %v278 = vpack.c.b16 %v250, %v249
    %v279 = vpack.c.b16 %v252, %v251
    %v280 = vpack.c.b16 %v254, %v253
    %v281 = vpack.c.b16 %v256, %v255
    %v282 = vpack.c.b16 %v258, %v257
    %v283 = vpack.c.b16 %v260, %v259
    %v284 = vpack.c.b16 %v262, %v261
    %v285 = vpack.c.b16 %v264, %v263
    %v286 = vpack.c.b16 %v266, %v265
    %v287 = vpack.c.b16 %v268, %v267
    %v288 = vpack.c.b16 %v270, %v269
    %v289 = vpack.c.b16 %v272, %v271
    %v290 = vpack.c.b16 %v274, %v273
    %307 = vmatprep.subr.bf16.mxu0 0
    %308 = vmatpush1.bf16.msra.mxu0 %v275
    %309 = vmatprep.subr.bf16.mxu0 0
    %310 = vmatpush1.bf16.msra.mxu0 %v276
    %311 = vmatprep.subr.bf16.mxu0 0
    %312 = vmatpush1.bf16.msra.mxu0 %v277
    %313 = vmatprep.subr.bf16.mxu0 0
    %314 = vmatpush1.bf16.msra.mxu0 %v278
    %315 = vmatprep.subr.bf16.mxu0 0
    %316 = vmatpush1.bf16.msra.mxu0 %v279
    %317 = vmatprep.subr.bf16.mxu0 0
    %318 = vmatpush1.bf16.msra.mxu0 %v280
    %319 = vmatprep.subr.bf16.mxu0 0
    %320 = vmatpush1.bf16.msra.mxu0 %v281
    %321 = vmatprep.subr.bf16.mxu0 0
    %322 = vmatpush1.bf16.msra.mxu0 %v282
    %323 = vmatprep.subr.bf16.mxu0 0
    %324 = vmatpush1.bf16.msra.mxu0 %v283
    %325 = vmatprep.subr.bf16.mxu0 0
    %326 = vmatpush1.bf16.msra.mxu0 %v284
    %327 = vmatprep.subr.bf16.mxu0 0
    %328 = vmatpush1.bf16.msra.mxu0 %v285
    %329 = vmatprep.subr.bf16.mxu0 0
    %330 = vmatpush1.bf16.msra.mxu0 %v286
    %331 = vmatprep.subr.bf16.mxu0 0
    %332 = vmatpush1.bf16.msra.mxu0 %v287
    %333 = vmatprep.subr.bf16.mxu0 0
    %334 = vmatpush1.bf16.msra.mxu0 %v288
    %335 = vmatprep.subr.bf16.mxu0 0
    %336 = vmatpush1.bf16.msra.mxu0 %v289
    %337 = vmatprep.subr.bf16.mxu0 0
    %338 = vmatpush1.bf16.msra.mxu0 %v290
    %339 = vmatprep.mubr.bf16.mxu0 %v180
    %340 = vmatmul.mubr.bf16.gmra.mrb[0].mxu0 %v179
    %v341 = vpop.f32.mrb[0].mxu0
    %v342 = vadd.f32 0.0, %v341
    %v343 = vpop.f32.mrb[0].mxu0
    %v344 = vpop.f32.mrb[0].mxu0
    %v345 = vadd.f32 0.0, %v344
    %v346 = vpop.f32.mrb[0].mxu0
    %347 = vmatprep.mubr.bf16.mxu0 %v182
    %348 = vmatmul.mubr.bf16.gmra.mrb[0].mxu0 %v181
    %v349 = vpop.f32.mrb[0].mxu0
    %v350 = vadd.f32 0.0, %v349
    %v351 = vpop.f32.mrb[0].mxu0
    %v352 = vpop.f32.mrb[0].mxu0
    %v353 = vadd.f32 0.0, %v352
    %v354 = vpop.f32.mrb[0].mxu0
    %355 = vmatprep.mubr.bf16.mxu0 %v184
    %356 = vmatmul.mubr.bf16.gmra.mrb[0].mxu0 %v183
    %v357 = vpop.f32.mrb[0].mxu0
    %v358 = vadd.f32 0.0, %v357
    %v359 = vpop.f32.mrb[0].mxu0
    %v360 = vpop.f32.mrb[0].mxu0
    %v361 = vadd.f32 0.0, %v360
    %v362 = vpop.f32.mrb[0].mxu0
    %363 = vmatprep.mubr.bf16.mxu0 %v186
    %364 = vmatmul.mubr.bf16.gmra.mrb[0].mxu0 %v185
    %v365 = vpop.f32.mrb[0].mxu0
    %v366 = vadd.f32 0.0, %v365
    %v367 = vpop.f32.mrb[0].mxu0
    %v368 = vpop.f32.mrb[0].mxu0
    %v369 = vadd.f32 0.0, %v368
    %v370 = vpop.f32.mrb[0].mxu0
    %371 = vmatprep.mubr.bf16.mxu0 %v188
    %372 = vmatmul.mubr.bf16.gmra.mrb[0].mxu0 %v187
    %v373 = vpop.f32.mrb[0].mxu0
    %v374 = vadd.f32 0.0, %v373
    %v375 = vpop.f32.mrb[0].mxu0
    %v376 = vpop.f32.mrb[0].mxu0
    %v377 = vadd.f32 0.0, %v376
    %v378 = vpop.f32.mrb[0].mxu0
    %379 = vmatprep.mubr.bf16.mxu0 %v190
    %380 = vmatmul.mubr.bf16.gmra.mrb[0].mxu0 %v189
    %v381 = vpop.f32.mrb[0].mxu0
    %v382 = vadd.f32 0.0, %v381
    %v383 = vpop.f32.mrb[0].mxu0
    %v384 = vpop.f32.mrb[0].mxu0
    %v385 = vadd.f32 0.0, %v384
    %v386 = vpop.f32.mrb[0].mxu0
    %387 = vmatprep.mubr.bf16.mxu0 %v192
    %388 = vmatmul.mubr.bf16.gmra.mrb[0].mxu0 %v191
    %v389 = vpop.f32.mrb[0].mxu0
    %v390 = vadd.f32 0.0, %v389
    %v391 = vpop.f32.mrb[0].mxu0
    %v392 = vpop.f32.mrb[0].mxu0
    %v393 = vadd.f32 0.0, %v392
    %v394 = vpop.f32.mrb[0].mxu0
    %395 = vmatprep.mubr.bf16.mxu0 %v194
    %396 = vmatmul.mubr.bf16.gmra.mrb[0].mxu0 %v193
    %v397 = vpop.f32.mrb[0].mxu0
    %v398 = vadd.f32 0.0, %v397
    %v399 = vpop.f32.mrb[0].mxu0
    %v400 = vpop.f32.mrb[0].mxu0
    %v401 = vadd.f32 0.0, %v400
    %v402 = vpop.f32.mrb[0].mxu0
    %403 = vdwg.mxu0
    %v404 = vadd.f32 %v67, %v342
    %v405 = vadd.f32 %v68, %v345
    %v406 = vadd.f32 %v69, %v350
    %v407 = vadd.f32 %v70, %v353
    %v408 = vadd.f32 %v71, %v358
    %v409 = vadd.f32 %v72, %v361
    %v410 = vadd.f32 %v73, %v366
    %v411 = vadd.f32 %v74, %v369
    %v412 = vadd.f32 %v75, %v374
    %v413 = vadd.f32 %v76, %v377
    %v414 = vadd.f32 %v77, %v382
    %v415 = vadd.f32 %v78, %v385
    %v416 = vadd.f32 %v79, %v390
    %v417 = vadd.f32 %v80, %v393
    %v418 = vadd.f32 %v81, %v398
    %v419 = vadd.f32 %v82, %v401
    %420 = vst [vmem:[#allocation7] sm:$0xff] %v404
    %421 = vst [vmem:[#allocation7 + $0x8] sm:$0xff] %v405
    %422 = vst [vmem:[#allocation7 + $0x10] sm:$0xff] %v406
    %423 = vst [vmem:[#allocation7 + $0x18] sm:$0xff] %v407
    %424 = vst [vmem:[#allocation7 + $0x20] sm:$0xff] %v408
    %425 = vst [vmem:[#allocation7 + $0x28] sm:$0xff] %v409
    %426 = vst [vmem:[#allocation7 + $0x30] sm:$0xff] %v410
    %427 = vst [vmem:[#allocation7 + $0x38] sm:$0xff] %v411
    %428 = vst [vmem:[#allocation7 + $0x40] sm:$0xff] %v412
    %429 = vst [vmem:[#allocation7 + $0x48] sm:$0xff] %v413
    %430 = vst [vmem:[#allocation7 + $0x50] sm:$0xff] %v414
    %431 = vst [vmem:[#allocation7 + $0x58] sm:$0xff] %v415
    %432 = vst [vmem:[#allocation7 + $0x60] sm:$0xff] %v416
    %433 = vst [vmem:[#allocation7 + $0x68] sm:$0xff] %v417
    %434 = vst [vmem:[#allocation7 + $0x70] sm:$0xff] %v418
    %435 = vst [vmem:[#allocation7 + $0x78] sm:$0xff] %v419
    // Predicated region
    $region30: #{tpu_custom_call.1} parent=1 // pred_check
      %p436 = pneg %p47
    $region31: #{tpu_custom_call.1} parent=1 // pred_check_branch
      %438 = sbr.rel (%p436) target = $region33
    $region32: #{tpu_custom_call.1} parent=1 // pred_region
      %v439 = vld [vmem:[#allocation7] sm:$0xff]
      %v440 = vld [vmem:[#allocation7 + $0x8] sm:$0xff]
      %v441 = vld [vmem:[#allocation7 + $0x10] sm:$0xff]
      %v442 = vld [vmem:[#allocation7 + $0x18] sm:$0xff]
      %v443 = vld [vmem:[#allocation7 + $0x20] sm:$0xff]
      %v444 = vld [vmem:[#allocation7 + $0x28] sm:$0xff]
      %v445 = vld [vmem:[#allocation7 + $0x30] sm:$0xff]
      %v446 = vld [vmem:[#allocation7 + $0x38] sm:$0xff]
      %v447 = vld [vmem:[#allocation7 + $0x40] sm:$0xff]
      %v448 = vld [vmem:[#allocation7 + $0x48] sm:$0xff]
      %v449 = vld [vmem:[#allocation7 + $0x50] sm:$0xff]
      %v450 = vld [vmem:[#allocation7 + $0x58] sm:$0xff]
      %v451 = vld [vmem:[#allocation7 + $0x60] sm:$0xff]
      %v452 = vld [vmem:[#allocation7 + $0x68] sm:$0xff]
      %v453 = vld [vmem:[#allocation7 + $0x70] sm:$0xff]
      %v454 = vld [vmem:[#allocation7 + $0x78] sm:$0xff]
      %v455 = vld [vmem:[%s2] sm:$0x1]
      %v457 = vlaneseq
      %v458 = vshrl.u32 %v457, 7
      %v459 = vsub.s32 0, %v458
      %v460 = vrot.slane %v455, %v459
      %v462 = vmul.f32 %v439, %v460
      %v463 = vmul.f32 %v440, %v460
      %v464 = vmul.f32 %v441, %v460
      %v465 = vmul.f32 %v442, %v460
      %v466 = vmul.f32 %v443, %v460
      %v467 = vmul.f32 %v444, %v460
      %v468 = vmul.f32 %v445, %v460
      %v469 = vmul.f32 %v446, %v460
      %v470 = vmul.f32 %v447, %v460
      %v471 = vmul.f32 %v448, %v460
      %v472 = vmul.f32 %v449, %v460
      %v473 = vmul.f32 %v450, %v460
      %v474 = vmul.f32 %v451, %v460
      %v475 = vmul.f32 %v452, %v460
      %v476 = vmul.f32 %v453, %v460
      %v477 = vmul.f32 %v454, %v460
      %v478 = vld [vmem:[%s3] sm:$0x1]
      %v480 = vlaneseq
      %v481 = vshrl.u32 %v480, 7
      %v482 = vsub.s32 0, %v481
      %v483 = vrot.slane %v478, %v482
      %v485 = vadd.f32 %v462, %v483
      %v486 = vadd.f32 %v463, %v483
      %v487 = vadd.f32 %v464, %v483
      %v488 = vadd.f32 %v465, %v483
      %v489 = vadd.f32 %v466, %v483
      %v490 = vadd.f32 %v467, %v483
      %v491 = vadd.f32 %v468, %v483
      %v492 = vadd.f32 %v469, %v483
      %v493 = vadd.f32 %v470, %v483
      %v494 = vadd.f32 %v471, %v483
      %v495 = vadd.f32 %v472, %v483
      %v496 = vadd.f32 %v473, %v483
      %v497 = vadd.f32 %v474, %v483
      %v498 = vadd.f32 %v475, %v483
      %v499 = vadd.f32 %v476, %v483
      %v500 = vadd.f32 %v477, %v483
      %v501 = vmax.f32 %v485, 0.0
      %v502 = vmax.f32 %v486, 0.0
      %v503 = vmax.f32 %v487, 0.0
      %v504 = vmax.f32 %v488, 0.0
      %v505 = vmax.f32 %v489, 0.0
      %v506 = vmax.f32 %v490, 0.0
      %v507 = vmax.f32 %v491, 0.0
      %v508 = vmax.f32 %v492, 0.0
      %v509 = vmax.f32 %v493, 0.0
      %v510 = vmax.f32 %v494, 0.0
      %v511 = vmax.f32 %v495, 0.0
      %v512 = vmax.f32 %v496, 0.0
      %v513 = vmax.f32 %v497, 0.0
      %v514 = vmax.f32 %v498, 0.0
      %v515 = vmax.f32 %v499, 0.0
      %v516 = vmax.f32 %v500, 0.0
      %517 = vst [vmem:[#allocation7] sm:$0xff] %v501
      %518 = vst [vmem:[#allocation7 + $0x8] sm:$0xff] %v502
      %519 = vst [vmem:[#allocation7 + $0x10] sm:$0xff] %v503
      %520 = vst [vmem:[#allocation7 + $0x18] sm:$0xff] %v504
      %521 = vst [vmem:[#allocation7 + $0x20] sm:$0xff] %v505
      %522 = vst [vmem:[#allocation7 + $0x28] sm:$0xff] %v506
      %523 = vst [vmem:[#allocation7 + $0x30] sm:$0xff] %v507
      %524 = vst [vmem:[#allocation7 + $0x38] sm:$0xff] %v508
      %525 = vst [vmem:[#allocation7 + $0x40] sm:$0xff] %v509
      %526 = vst [vmem:[#allocation7 + $0x48] sm:$0xff] %v510
      %527 = vst [vmem:[#allocation7 + $0x50] sm:$0xff] %v511
      %528 = vst [vmem:[#allocation7 + $0x58] sm:$0xff] %v512
      %529 = vst [vmem:[#allocation7 + $0x60] sm:$0xff] %v513
      %530 = vst [vmem:[#allocation7 + $0x68] sm:$0xff] %v514
      %531 = vst [vmem:[#allocation7 + $0x70] sm:$0xff] %v515
      %532 = vst [vmem:[#allocation7 + $0x78] sm:$0xff] %v516
    $region33: #{tpu_custom_call.1} parent=1 // pred_fallthru
      _
    // Predicated region
    $region34: #{tpu_custom_call.1} parent=1 // pred_check
      _
    $region35: #{tpu_custom_call.1} parent=1 // pred_check_branch
      %534 = sbr.rel (0) target = $region37
    $region36: #{tpu_custom_call.1} parent=1 // pred_region
      %s536 = ssub.s32 2048, 2048
      %537 = vsyncadd [#allocation4], %s536
      %s538 = sshll.u32 [#allocation7], 4
      %s539 = int_to_ptr.vmem [resolvable:$true] %s538
      %544 = dma.vmem_to_hbm [thread:$0]  %s539, 2048, %s4, [#allocation4], 128, 128, 8
    $region37: #{tpu_custom_call.1} parent=1 // pred_fallthru
      _
    // Predicated region
    $region38: #{tpu_custom_call.1} parent=1 // pred_check
      _
    $region39: #{tpu_custom_call.1} parent=1 // pred_check_branch
      %546 = sbr.rel (0) target = $region41
    $region40: #{tpu_custom_call.1} parent=1 // pred_region
      %547 = dma.done [#allocation4], 2048
    $region41: #{tpu_custom_call.1} parent=1 // pred_fallthru
      _
    %548 = vsyncpa [#allocation3], 1
    %549 = vsyncpa [#allocation6], 1
    %550 = vsyncpa [#allocation4], 1

</llo_original>
